<compile_context>
chip_gen: v7x
topology: tpu7x:2x2x1
jax: 0.10.0
libtpu: 0.0.40
codegen_flags: <defaults>
</compile_context>

<pallas_src>
import jax
import jax.numpy as jnp
from jax.experimental import pallas as pl
from jax.experimental.pallas import tpu as pltpu


def _student_kernel(x_ref, w1_ref, b1_ref, w2_ref, b2_ref, o_ref):
    # In-kernel bf16 cast of the activation tile (x arrives in its input dtype,
    # typically f32) -> avoids a separate HBM convert pass in the wrapper.
    x = x_ref[...].astype(jnp.bfloat16)
    # fc1: (TB, 784)bf16 @ (784, 256)bf16 -> f32 accum, f32 bias + ReLU epilogue
    h = jnp.dot(x, w1_ref[...], preferred_element_type=jnp.float32)
    h = jnp.maximum(h + b1_ref[...], 0.0)
    # Dropout(0.2) in eval mode == identity
    # fc2: (TB, 256)bf16 @ (256, 10)bf16 -> f32 accum, f32 bias
    o = jnp.dot(h.astype(jnp.bfloat16), w2_ref[...],
                preferred_element_type=jnp.float32)
    o_ref[...] = o + b2_ref[...]


def _round_up(n, m):
    return ((n + m - 1) // m) * m


def student_forward(x, w1, b1, w2, b2, *, block_b=2048):
    """x: any shape reshapable to (-1, 784). Weights stored (in, out) = torch W.T."""
    x2d = x.reshape(-1, 784)
    B = x2d.shape[0]

    # Small, VMEM-resident operands: cast weights to bf16 (cheap, ~0.4 MiB total),
    # keep biases f32 (added after f32 accumulation).
    w1b = w1.astype(jnp.bfloat16)
    w2b = w2.astype(jnp.bfloat16)
    b1f = b1.astype(jnp.float32).reshape(1, 256)
    b2f = b2.astype(jnp.float32).reshape(1, 10)

    # Tile selection:
    #  - n_blocks first (>= 2 when the batch has at least 2x16 rows, so both v7x
    #    TensorCores get work), then TB = round_up(cdiv(B, n_blocks), 16) to
    #    minimize zero-padding waste. TB is a multiple of 16 for bf16 packing.
    n_blocks = max(pl.cdiv(B, block_b), min(2, pl.cdiv(B, 16)))
    TB = min(block_b, _round_up(pl.cdiv(B, n_blocks), 16))
    n_blocks = pl.cdiv(B, TB)
    B_pad = n_blocks * TB
    if B_pad != B:
        # Only pays an extra pass over x for ragged batches, and only for the
        # minimal amount of padding (<= 15 rows beyond cdiv rounding).
        x2d = jnp.pad(x2d, ((0, B_pad - B), (0, 0)))

    out = pl.pallas_call(
        _student_kernel,
        out_shape=jax.ShapeDtypeStruct((B_pad, 10), jnp.float32),
        grid=(n_blocks,),
        in_specs=[
            pl.BlockSpec((TB, 784), lambda i: (i, 0)),      # x tile (pipelined, input dtype)
            pl.BlockSpec((784, 256), lambda i: (0, 0)),     # w1 (VMEM-resident)
            pl.BlockSpec((1, 256), lambda i: (0, 0)),       # b1
            pl.BlockSpec((256, 10), lambda i: (0, 0)),      # w2
            pl.BlockSpec((1, 10), lambda i: (0, 0)),        # b2
        ],
        out_specs=pl.BlockSpec((TB, 10), lambda i: (i, 0)),
        compiler_params=pltpu.CompilerParams(
            dimension_semantics=("parallel",),              # megacore on v7x
            vmem_limit_bytes=32 * 1024 * 1024,
        ),
    )(x2d, w1b, b1f, w2b, b2f)
    return out[:B]


def init_params(key):
    """Deterministic init mimicking nn.Linear default (U[-1/sqrt(fan_in), +])."""
    k1, k2, k3, k4 = jax.random.split(key, 4)
    lim1 = 1.0 / jnp.sqrt(784.0)
    lim2 = 1.0 / jnp.sqrt(256.0)
    # stored as (in, out) == PyTorch weight.T
    w1 = jax.random.uniform(k1, (784, 256), jnp.float32, -lim1, lim1)
    b1 = jax.random.uniform(k2, (1, 256), jnp.float32, -lim1, lim1)
    w2 = jax.random.uniform(k3, (256, 10), jnp.float32, -lim2, lim2)
    b2 = jax.random.uniform(k4, (1, 10), jnp.float32, -lim2, lim2)
    return w1, b1, w2, b2


def _reference(x, w1, b1, w2, b2):
    # Reference applying the same bf16 rounding of matmul operands, f32 accum.
    # NOTE: true deviation from an all-f32 PyTorch model is bf16-scale (~1e-2);
    # acceptable for inference.
    x2d = x.reshape(-1, 784)
    xb = x2d.astype(jnp.bfloat16).astype(jnp.float32)
    w1b = w1.astype(jnp.bfloat16).astype(jnp.float32)
    w2b = w2.astype(jnp.bfloat16).astype(jnp.float32)
    h = jnp.maximum(xb @ w1b + b1.reshape(1, 256), 0.0)
    return h.astype(jnp.bfloat16).astype(jnp.float32) @ w2b + b2.reshape(1, 10)


if __name__ == "__main__":
    key = jax.random.PRNGKey(0)
    kx, kp = jax.random.split(key)

    # Small MNIST-like input: (batch=2, 1, 28, 28) -> view(-1, 784)
    x = jax.random.normal(kx, (2, 1, 28, 28), jnp.float32)
    w1, b1, w2, b2 = init_params(kp)

    out = student_forward(x, w1, b1, w2, b2)
    out = jax.block_until_ready(out)
    assert out.shape == (2, 10)
    ref = _reference(x, w1, b1, w2, b2)
    assert jnp.allclose(out, ref, atol=2e-2, rtol=2e-2)

    # Batch that is not a multiple of the tile size / 16 (exercises padding +
    # the >=2-block split for v7x megacore).
    x_big = jax.random.normal(kx, (37, 1, 28, 28), jnp.float32)
    out_big = jax.block_until_ready(student_forward(x_big, w1, b1, w2, b2))
    assert out_big.shape == (37, 10)
    ref_big = _reference(x_big, w1, b1, w2, b2)
    assert jnp.allclose(out_big, ref_big, atol=2e-2, rtol=2e-2)

    print("KERNEL_OK")
</pallas_src>

<mosaic_0001>
module attributes {stable_mosaic.version = 11 : i64} {
  func.func @_student_kernel(%arg0: i32, %arg1: memref<16x784xf32, #tpu.memory_space<vmem>>, %arg2: memref<784x256xbf16, #tpu.memory_space<vmem>>, %arg3: memref<1x256xf32, #tpu.memory_space<vmem>>, %arg4: memref<256x10xbf16, #tpu.memory_space<vmem>>, %arg5: memref<1x10xf32, #tpu.memory_space<vmem>>, %arg6: memref<16x10xf32, #tpu.memory_space<vmem>>) attributes {dimension_semantics = [#tpu.dimension_semantics<parallel>], iteration_bounds = array<i64: 1>, scalar_prefetch = 0 : i64, scratch_operands = 0 : i64, tpu.core_type = #tpu.core_type<tc>, window_params = [{transform_indices = @transform_0, window_bounds = array<i64: 16, 784>}, {pipeline_mode = #tpu.pipeline_mode<synchronous>, transform_indices = @transform_1, window_bounds = array<i64: 784, 256>}, {pipeline_mode = #tpu.pipeline_mode<synchronous>, transform_indices = @transform_2, window_bounds = array<i64: 1, 256>}, {pipeline_mode = #tpu.pipeline_mode<synchronous>, transform_indices = @transform_3, window_bounds = array<i64: 256, 10>}, {pipeline_mode = #tpu.pipeline_mode<synchronous>, transform_indices = @transform_4, window_bounds = array<i64: 1, 10>}, {transform_indices = @transform_5, window_bounds = array<i64: 16, 10>}]} {
    %c0 = arith.constant 0 : index
    %c0_0 = arith.constant 0 : index
    %0 = vector.load %arg1[%c0, %c0_0] : memref<16x784xf32, #tpu.memory_space<vmem>>, vector<16x784xf32>
    %1 = arith.truncf %0 : vector<16x784xf32> to vector<16x784xbf16>
    %c0_1 = arith.constant 0 : index
    %c0_2 = arith.constant 0 : index
    %2 = vector.load %arg2[%c0_1, %c0_2] : memref<784x256xbf16, #tpu.memory_space<vmem>>, vector<784x256xbf16>
    %cst = arith.constant dense<0.000000e+00> : vector<16x256xf32>
    %3 = tpu.matmul %1, %2, %cst {dimension_numbers = #tpu.dot_dimension_numbers<[1], [0], [0], [1], [0, 0, 1, 1], [], []>} : vector<16x784xbf16>, vector<784x256xbf16>, vector<16x256xf32> -> vector<16x256xf32>
    %c0_3 = arith.constant 0 : index
    %c0_4 = arith.constant 0 : index
    %4 = vector.load %arg3[%c0_3, %c0_4] : memref<1x256xf32, #tpu.memory_space<vmem>>, vector<1x256xf32>
    %5 = vector.broadcast %4 : vector<1x256xf32> to vector<16x256xf32>
    %6 = arith.addf %3, %5 : vector<16x256xf32>
    %cst_5 = arith.constant 0.000000e+00 : f32
    %7 = vector.broadcast %cst_5 : f32 to vector<16x256xf32>
    %8 = arith.maximumf %6, %7 : vector<16x256xf32>
    %9 = arith.truncf %8 : vector<16x256xf32> to vector<16x256xbf16>
    %c0_6 = arith.constant 0 : index
    %c0_7 = arith.constant 0 : index
    %10 = vector.load %arg4[%c0_6, %c0_7] : memref<256x10xbf16, #tpu.memory_space<vmem>>, vector<256x10xbf16>
    %cst_8 = arith.constant dense<0.000000e+00> : vector<16x10xf32>
    %11 = tpu.matmul %9, %10, %cst_8 {dimension_numbers = #tpu.dot_dimension_numbers<[1], [0], [0], [1], [0, 0, 1, 1], [], []>} : vector<16x256xbf16>, vector<256x10xbf16>, vector<16x10xf32> -> vector<16x10xf32>
    %c0_9 = arith.constant 0 : index
    %c0_10 = arith.constant 0 : index
    %12 = vector.load %arg5[%c0_9, %c0_10] : memref<1x10xf32, #tpu.memory_space<vmem>>, vector<1x10xf32>
    %13 = vector.broadcast %12 : vector<1x10xf32> to vector<16x10xf32>
    %14 = arith.addf %11, %13 : vector<16x10xf32>
    %c0_11 = arith.constant 0 : index
    %c0_12 = arith.constant 0 : index
    %15 = vector.load %arg6[%c0_11, %c0_12] : memref<16x10xf32, #tpu.memory_space<vmem>>, vector<16x10xf32>
    tpu.vector_store %arg6[%c0_11, %c0_12], %14 {strides = array<i32>} : memref<16x10xf32, #tpu.memory_space<vmem>>, vector<16x10xf32>,
    return
  }
  func.func @transform_0(%arg0: i32) -> (i32, i32) {
    %c0_i32 = arith.constant 0 : i32
    %c0_i32_0 = arith.constant 0 : i32
    return %arg0, %c0_i32 : i32, i32
  }
  func.func @transform_1(%arg0: i32) -> (i32, i32) {
    %c0_i32 = arith.constant 0 : i32
    %c0_i32_0 = arith.constant 0 : i32
    %c0_i32_1 = arith.constant 0 : i32
    return %c0_i32, %c0_i32_0 : i32, i32
  }
  func.func @transform_2(%arg0: i32) -> (i32, i32) {
    %c0_i32 = arith.constant 0 : i32
    %c0_i32_0 = arith.constant 0 : i32
    %c0_i32_1 = arith.constant 0 : i32
    return %c0_i32, %c0_i32_0 : i32, i32
  }
  func.func @transform_3(%arg0: i32) -> (i32, i32) {
    %c0_i32 = arith.constant 0 : i32
    %c0_i32_0 = arith.constant 0 : i32
    %c0_i32_1 = arith.constant 0 : i32
    return %c0_i32, %c0_i32_0 : i32, i32
  }
  func.func @transform_4(%arg0: i32) -> (i32, i32) {
    %c0_i32 = arith.constant 0 : i32
    %c0_i32_0 = arith.constant 0 : i32
    %c0_i32_1 = arith.constant 0 : i32
    return %c0_i32, %c0_i32_0 : i32, i32
  }
  func.func @transform_5(%arg0: i32) -> (i32, i32) {
    %c0_i32 = arith.constant 0 : i32
    %c0_i32_0 = arith.constant 0 : i32
    return %arg0, %c0_i32 : i32, i32
  }
}

</mosaic_0001>

<llo_original>
// kernel: tpu_custom_call.1
$region0: #{tpu_custom_call.1}
  #allocation0 [shape = 'u32[]', space=smem, size = 0x4, offset = 0x4, fixed_abs, tag = 'smem constant byte address 0x4 - core index']
  #allocation1 [shape = 'u32[144,128]{1,0:T(1,128)}', space=vmem, size = 0x12000, scoped, tag = 'internal scratch']
  %s0 = inlined_call_operand.vmem [shape: f32[16,784], index: 0, kind: input, shape index: {}]
  %s1 = inlined_call_operand.hbm [shape: bf16[784,256], index: 1, kind: input, shape index: {}]
  %s2 = inlined_call_operand.vmem [shape: f32[1,256], index: 2, kind: input, shape index: {}]
  %s3 = inlined_call_operand.vmem [shape: bf16[256,10], index: 3, kind: input, shape index: {}]
  %s4 = inlined_call_operand.vmem [shape: f32[1,10], index: 4, kind: input, shape index: {}]
  %s5 = inlined_call_operand.hbm [shape: f32[16,10], index: 5, kind: output, shape index: {}]
  %s6 = sld [smem:[#allocation0]]
  $region34: #{tpu_custom_call.1} parent=0
    _
  %s8 = ssub.s32 1, %s6
  %s9 = scalar_select 0, %s8, %s6
  $region1: #{tpu_custom_call.1} parent=0
    #allocation2 [shape = 'u8[401408]{0}', space=vmem, size = 0x62000, scoped, tag = 'input window, operand 1, single buffered']
    #allocation3 [shape = 's32[1]{0}', space=sflag, size = 0x4, scoped, tag = 'scoped memory for tpu_custom_call.1']
    #allocation4 [shape = 's32[1]{0}', space=sflag, size = 0x4, scoped, tag = 'scoped memory for tpu_custom_call.1']
    #allocation5 [shape = 'u8[8192]{0}', space=vmem, size = 0x2000, scoped, tag = 'output window, operand 0, single buffered']
    %10 = vsyncpa [#allocation3], 0
    %11 = vsyncpa [#allocation4], 0
    // Predicated region
    $region2: #{tpu_custom_call.1} parent=1 // pred_check
      _
    $region3: #{tpu_custom_call.1} parent=1 // pred_check_branch
      %13 = sbr.rel (0) target = $region5
    $region4: #{tpu_custom_call.1} parent=1 // pred_region
      _
    $region5: #{tpu_custom_call.1} parent=1 // pred_fallthru
      _
    // Predicated region
    $region6: #{tpu_custom_call.1} parent=1 // pred_check
      _
    $region7: #{tpu_custom_call.1} parent=1 // pred_check_branch
      %15 = sbr.rel (0) target = $region9
    $region8: #{tpu_custom_call.1} parent=1 // pred_region
      %s17 = ssub.s32 12544, 12544
      %18 = vsyncadd [#allocation3], %s17
      %s19 = sshll.u32 [#allocation2], 4
      %s20 = int_to_ptr.vmem [resolvable:$true] %s19
      %25 = dma.hbm_to_vmem [thread:$0]  %s1, 12544, %s20, [#allocation3], 128, 128, 8
    $region9: #{tpu_custom_call.1} parent=1 // pred_fallthru
      _
    // Predicated region
    $region10: #{tpu_custom_call.1} parent=1 // pred_check
      _
    $region11: #{tpu_custom_call.1} parent=1 // pred_check_branch
      %27 = sbr.rel (0) target = $region13
    $region12: #{tpu_custom_call.1} parent=1 // pred_region
      _
    $region13: #{tpu_custom_call.1} parent=1 // pred_fallthru
      _
    // Predicated region
    $region14: #{tpu_custom_call.1} parent=1 // pred_check
      _
    $region15: #{tpu_custom_call.1} parent=1 // pred_check_branch
      %29 = sbr.rel (0) target = $region17
    $region16: #{tpu_custom_call.1} parent=1 // pred_region
      _
    $region17: #{tpu_custom_call.1} parent=1 // pred_fallthru
      _
    // Predicated region
    $region18: #{tpu_custom_call.1} parent=1 // pred_check
      _
    $region19: #{tpu_custom_call.1} parent=1 // pred_check_branch
      %31 = sbr.rel (0) target = $region21
    $region20: #{tpu_custom_call.1} parent=1 // pred_region
      _
    $region21: #{tpu_custom_call.1} parent=1 // pred_fallthru
      _
    // Predicated region
    $region22: #{tpu_custom_call.1} parent=1 // pred_check
      _
    $region23: #{tpu_custom_call.1} parent=1 // pred_check_branch
      %33 = sbr.rel (0) target = $region25
    $region24: #{tpu_custom_call.1} parent=1 // pred_region
      %34 = dma.done [#allocation3], 12544
    $region25: #{tpu_custom_call.1} parent=1 // pred_fallthru
      _
    %v36 = vld [vmem:[%s0] sm:$0xff]
    %v37 = vld [vmem:[%s0 + $0x8] sm:$0xff]
    %v38 = vld [vmem:[%s0 + $0x10] sm:$0xff]
    %v39 = vld [vmem:[%s0 + $0x18] sm:$0xff]
    %v40 = vld [vmem:[%s0 + $0x20] sm:$0xff]
    %v41 = vld [vmem:[%s0 + $0x28] sm:$0xff]
    %v42 = vld [vmem:[%s0 + $0x30] sm:$0xff]
    %v43 = vld [vmem:[%s0 + $0x38] sm:$0xff]
    %v44 = vld [vmem:[%s0 + $0x40] sm:$0xff]
    %v45 = vld [vmem:[%s0 + $0x48] sm:$0xff]
    %v46 = vld [vmem:[%s0 + $0x50] sm:$0xff]
    %v47 = vld [vmem:[%s0 + $0x58] sm:$0xff]
    %v48 = vld [vmem:[%s0 + $0x60] sm:$0xff]
    %v49 = vld [vmem:[%s0 + $0x68] sm:$0xff]
    %v50 = vpack.c.bf16 %v43, %v36
    %v51 = vpack.c.bf16 %v44, %v37
    %v52 = vpack.c.bf16 %v45, %v38
    %v53 = vpack.c.bf16 %v46, %v39
    %v54 = vpack.c.bf16 %v47, %v40
    %v55 = vpack.c.bf16 %v48, %v41
    %v56 = vpack.c.bf16 %v49, %v42
    %v57 = vld [vmem:[#allocation2] sm:$0xff]
    %v58 = vld [vmem:[#allocation2 + $0x8] sm:$0xff]
    %v59 = vld [vmem:[#allocation2 + $0x10] sm:$0xff]
    %v60 = vld [vmem:[#allocation2 + $0x18] sm:$0xff]
    %v61 = vld [vmem:[#allocation2 + $0x20] sm:$0xff]
    %v62 = vld [vmem:[#allocation2 + $0x28] sm:$0xff]
    %v63 = vld [vmem:[#allocation2 + $0x30] sm:$0xff]
    %v64 = vld [vmem:[#allocation2 + $0x38] sm:$0xff]
    %v65 = vld [vmem:[#allocation2 + $0x40] sm:$0xff]
    %v66 = vld [vmem:[#allocation2 + $0x48] sm:$0xff]
    %v67 = vld [vmem:[#allocation2 + $0x50] sm:$0xff]
    %v68 = vld [vmem:[#allocation2 + $0x58] sm:$0xff]
    %v69 = vld [vmem:[#allocation2 + $0x60] sm:$0xff]
    %v70 = vld [vmem:[#allocation2 + $0x68] sm:$0xff]
    %v71 = vld [vmem:[#allocation2 + $0x70] sm:$0xff]
    %v72 = vld [vmem:[#allocation2 + $0x78] sm:$0xff]
    %v73 = vld [vmem:[#allocation2 + $0x80] sm:$0xff]
    %v74 = vld [vmem:[#allocation2 + $0x88] sm:$0xff]
    %v75 = vld [vmem:[#allocation2 + $0x90] sm:$0xff]
    %v76 = vld [vmem:[#allocation2 + $0x98] sm:$0xff]
    %v77 = vld [vmem:[#allocation2 + $0xa0] sm:$0xff]
    %v78 = vld [vmem:[#allocation2 + $0xa8] sm:$0xff]
    %v79 = vld [vmem:[#allocation2 + $0xb0] sm:$0xff]
    %v80 = vld [vmem:[#allocation2 + $0xb8] sm:$0xff]
    %v81 = vld [vmem:[#allocation2 + $0xc0] sm:$0xff]
    %v82 = vld [vmem:[#allocation2 + $0xc8] sm:$0xff]
    %v83 = vld [vmem:[#allocation2 + $0xd0] sm:$0xff]
    %v84 = vld [vmem:[#allocation2 + $0xd8] sm:$0xff]
    %v85 = vld [vmem:[#allocation2 + $0xe0] sm:$0xff]
    %v86 = vld [vmem:[#allocation2 + $0xe8] sm:$0xff]
    %v87 = vld [vmem:[#allocation2 + $0xf0] sm:$0xff]
    %v88 = vld [vmem:[#allocation2 + $0xf8] sm:$0xff]
    %v89 = vld [vmem:[#allocation2 + $0x100] sm:$0xff]
    %v90 = vld [vmem:[#allocation2 + $0x108] sm:$0xff]
    %v91 = vld [vmem:[#allocation2 + $0x110] sm:$0xff]
    %v92 = vld [vmem:[#allocation2 + $0x118] sm:$0xff]
    %v93 = vld [vmem:[#allocation2 + $0x120] sm:$0xff]
    %v94 = vld [vmem:[#allocation2 + $0x128] sm:$0xff]
    %v95 = vld [vmem:[#allocation2 + $0x130] sm:$0xff]
    %v96 = vld [vmem:[#allocation2 + $0x138] sm:$0xff]
    %v97 = vld [vmem:[#allocation2 + $0x140] sm:$0xff]
    %v98 = vld [vmem:[#allocation2 + $0x148] sm:$0xff]
    %v99 = vld [vmem:[#allocation2 + $0x150] sm:$0xff]
    %v100 = vld [vmem:[#allocation2 + $0x158] sm:$0xff]
    %v101 = vld [vmem:[#allocation2 + $0x160] sm:$0xff]
    %v102 = vld [vmem:[#allocation2 + $0x168] sm:$0xff]
    %v103 = vld [vmem:[#allocation2 + $0x170] sm:$0xff]
    %v104 = vld [vmem:[#allocation2 + $0x178] sm:$0xff]
    %v105 = vld [vmem:[#allocation2 + $0x180] sm:$0xff]
    %v106 = vld [vmem:[#allocation2 + $0x188] sm:$0xff]
    %v107 = vld [vmem:[#allocation2 + $0x190] sm:$0xff]
    %v108 = vld [vmem:[#allocation2 + $0x198] sm:$0xff]
    %v109 = vld [vmem:[#allocation2 + $0x1a0] sm:$0xff]
    %v110 = vld [vmem:[#allocation2 + $0x1a8] sm:$0xff]
    %v111 = vld [vmem:[#allocation2 + $0x1b0] sm:$0xff]
    %v112 = vld [vmem:[#allocation2 + $0x1b8] sm:$0xff]
    %v113 = vld [vmem:[#allocation2 + $0x1c0] sm:$0xff]
    %v114 = vld [vmem:[#allocation2 + $0x1c8] sm:$0xff]
    %v115 = vld [vmem:[#allocation2 + $0x1d0] sm:$0xff]
    %v116 = vld [vmem:[#allocation2 + $0x1d8] sm:$0xff]
    %v117 = vld [vmem:[#allocation2 + $0x1e0] sm:$0xff]
    %v118 = vld [vmem:[#allocation2 + $0x1e8] sm:$0xff]
    %v119 = vld [vmem:[#allocation2 + $0x1f0] sm:$0xff]
    %v120 = vld [vmem:[#allocation2 + $0x1f8] sm:$0xff]
    %v121 = vld [vmem:[#allocation2 + $0x200] sm:$0xff]
    %v122 = vld [vmem:[#allocation2 + $0x208] sm:$0xff]
    %v123 = vld [vmem:[#allocation2 + $0x210] sm:$0xff]
    %v124 = vld [vmem:[#allocation2 + $0x218] sm:$0xff]
    %v125 = vld [vmem:[#allocation2 + $0x220] sm:$0xff]
    %v126 = vld [vmem:[#allocation2 + $0x228] sm:$0xff]
    %v127 = vld [vmem:[#allocation2 + $0x230] sm:$0xff]
    %v128 = vld [vmem:[#allocation2 + $0x238] sm:$0xff]
    %v129 = vld [vmem:[#allocation2 + $0x240] sm:$0xff]
    %v130 = vld [vmem:[#allocation2 + $0x248] sm:$0xff]
    %v131 = vld [vmem:[#allocation2 + $0x250] sm:$0xff]
    %v132 = vld [vmem:[#allocation2 + $0x258] sm:$0xff]
    %v133 = vld [vmem:[#allocation2 + $0x260] sm:$0xff]
    %v134 = vld [vmem:[#allocation2 + $0x268] sm:$0xff]
    %v135 = vld [vmem:[#allocation2 + $0x270] sm:$0xff]
    %v136 = vld [vmem:[#allocation2 + $0x278] sm:$0xff]
    %v137 = vld [vmem:[#allocation2 + $0x280] sm:$0xff]
    %v138 = vld [vmem:[#allocation2 + $0x288] sm:$0xff]
    %v139 = vld [vmem:[#allocation2 + $0x290] sm:$0xff]
    %v140 = vld [vmem:[#allocation2 + $0x298] sm:$0xff]
    %v141 = vld [vmem:[#allocation2 + $0x2a0] sm:$0xff]
    %v142 = vld [vmem:[#allocation2 + $0x2a8] sm:$0xff]
    %v143 = vld [vmem:[#allocation2 + $0x2b0] sm:$0xff]
    %v144 = vld [vmem:[#allocation2 + $0x2b8] sm:$0xff]
    %v145 = vld [vmem:[#allocation2 + $0x2c0] sm:$0xff]
    %v146 = vld [vmem:[#allocation2 + $0x2c8] sm:$0xff]
    %v147 = vld [vmem:[#allocation2 + $0x2d0] sm:$0xff]
    %v148 = vld [vmem:[#allocation2 + $0x2d8] sm:$0xff]
    %v149 = vld [vmem:[#allocation2 + $0x2e0] sm:$0xff]
    %v150 = vld [vmem:[#allocation2 + $0x2e8] sm:$0xff]
    %v151 = vld [vmem:[#allocation2 + $0x2f0] sm:$0xff]
    %v152 = vld [vmem:[#allocation2 + $0x2f8] sm:$0xff]
    %v153 = vld [vmem:[#allocation2 + $0x300] sm:$0xff]
    %v154 = vld [vmem:[#allocation2 + $0x308] sm:$0xff]
    %v155 = vld [vmem:[%s2] sm:$0x3]
    %v157 = vlaneseq
    %v158 = vshrl.u32 %v157, 7
    %v159 = vsub.s32 0, %v158
    %v160 = vrot.slane %v155, %v159
    %v161 = vlaneseq
    %v162 = vshrl.u32 %v161, 7
    %v163 = vsub.s32 1, %v162
    %v164 = vrot.slane %v155, %v163
    %v265 = vunpack.c.l.b16 %v57
    %v266 = vunpack.c.h.b16 %v57
    %v267 = vunpack.c.l.b16 %v58
    %v268 = vunpack.c.h.b16 %v58
    %v269 = vunpack.c.l.b16 %v59
    %v270 = vunpack.c.h.b16 %v59
    %v271 = vunpack.c.l.b16 %v60
    %v272 = vunpack.c.h.b16 %v60
    %v273 = vunpack.c.l.b16 %v61
    %v274 = vunpack.c.h.b16 %v61
    %v275 = vunpack.c.l.b16 %v62
    %v276 = vunpack.c.h.b16 %v62
    %v277 = vunpack.c.l.b16 %v63
    %v278 = vunpack.c.h.b16 %v63
    %v279 = vunpack.c.l.b16 %v64
    %v280 = vunpack.c.h.b16 %v64
    %v281 = vunpack.c.l.b16 %v65
    %v282 = vunpack.c.h.b16 %v65
    %v283 = vunpack.c.l.b16 %v66
    %v284 = vunpack.c.h.b16 %v66
    %v285 = vunpack.c.l.b16 %v67
    %v286 = vunpack.c.h.b16 %v67
    %v287 = vunpack.c.l.b16 %v68
    %v288 = vunpack.c.h.b16 %v68
    %v289 = vunpack.c.l.b16 %v69
    %v290 = vunpack.c.h.b16 %v69
    %v291 = vunpack.c.l.b16 %v70
    %v292 = vunpack.c.h.b16 %v70
    %v293 = vunpack.c.l.b16 %v71
    %v294 = vunpack.c.h.b16 %v71
    %v295 = vunpack.c.l.b16 %v72
    %v296 = vunpack.c.h.b16 %v72
    %v297 = vunpack.c.l.b16 %v73
    %v298 = vunpack.c.h.b16 %v73
    %v299 = vunpack.c.l.b16 %v74
    %v300 = vunpack.c.h.b16 %v74
    %v301 = vunpack.c.l.b16 %v75
    %v302 = vunpack.c.h.b16 %v75
    %v303 = vunpack.c.l.b16 %v76
    %v304 = vunpack.c.h.b16 %v76
    %v305 = vunpack.c.l.b16 %v77
    %v306 = vunpack.c.h.b16 %v77
    %v307 = vunpack.c.l.b16 %v78
    %v308 = vunpack.c.h.b16 %v78
    %v309 = vunpack.c.l.b16 %v79
    %v310 = vunpack.c.h.b16 %v79
    %v311 = vunpack.c.l.b16 %v80
    %v312 = vunpack.c.h.b16 %v80
    %v313 = vunpack.c.l.b16 %v81
    %v314 = vunpack.c.h.b16 %v81
    %v315 = vunpack.c.l.b16 %v82
    %v316 = vunpack.c.h.b16 %v82
    %v317 = vunpack.c.l.b16 %v83
    %v318 = vunpack.c.h.b16 %v83
    %v319 = vunpack.c.l.b16 %v84
    %v320 = vunpack.c.h.b16 %v84
    %v321 = vunpack.c.l.b16 %v85
    %v322 = vunpack.c.h.b16 %v85
    %v323 = vunpack.c.l.b16 %v86
    %v324 = vunpack.c.h.b16 %v86
    %v325 = vunpack.c.l.b16 %v87
    %v326 = vunpack.c.h.b16 %v87
    %v327 = vunpack.c.l.b16 %v88
    %v328 = vunpack.c.h.b16 %v88
    %v329 = vunpack.c.l.b16 %v89
    %v330 = vunpack.c.h.b16 %v89
    %v331 = vunpack.c.l.b16 %v90
    %v332 = vunpack.c.h.b16 %v90
    %v333 = vunpack.c.l.b16 %v91
    %v334 = vunpack.c.h.b16 %v91
    %v335 = vunpack.c.l.b16 %v92
    %v336 = vunpack.c.h.b16 %v92
    %v337 = vunpack.c.l.b16 %v93
    %v338 = vunpack.c.h.b16 %v93
    %v339 = vunpack.c.l.b16 %v94
    %v340 = vunpack.c.h.b16 %v94
    %v341 = vunpack.c.l.b16 %v95
    %v342 = vunpack.c.h.b16 %v95
    %v343 = vunpack.c.l.b16 %v96
    %v344 = vunpack.c.h.b16 %v96
    %v345 = vunpack.c.l.b16 %v97
    %v346 = vunpack.c.h.b16 %v97
    %v347 = vunpack.c.l.b16 %v98
    %v348 = vunpack.c.h.b16 %v98
    %v349 = vunpack.c.l.b16 %v99
    %v350 = vunpack.c.h.b16 %v99
    %v351 = vunpack.c.l.b16 %v100
    %v352 = vunpack.c.h.b16 %v100
    %v353 = vunpack.c.l.b16 %v101
    %v354 = vunpack.c.h.b16 %v101
    %v355 = vunpack.c.l.b16 %v102
    %v356 = vunpack.c.h.b16 %v102
    %v357 = vunpack.c.l.b16 %v103
    %v358 = vunpack.c.h.b16 %v103
    %v359 = vunpack.c.l.b16 %v104
    %v360 = vunpack.c.h.b16 %v104
    %v361 = vunpack.c.l.b16 %v105
    %v362 = vunpack.c.h.b16 %v105
    %v363 = vunpack.c.l.b16 %v106
    %v364 = vunpack.c.h.b16 %v106
    %v365 = vunpack.c.l.b16 %v107
    %v366 = vunpack.c.h.b16 %v107
    %v367 = vunpack.c.l.b16 %v108
    %v368 = vunpack.c.h.b16 %v108
    %v369 = vunpack.c.l.b16 %v109
    %v370 = vunpack.c.h.b16 %v109
    %v371 = vunpack.c.l.b16 %v110
    %v372 = vunpack.c.h.b16 %v110
    %v373 = vunpack.c.l.b16 %v111
    %v374 = vunpack.c.h.b16 %v111
    %v375 = vunpack.c.l.b16 %v112
    %v376 = vunpack.c.h.b16 %v112
    %v377 = vunpack.c.l.b16 %v113
    %v378 = vunpack.c.h.b16 %v113
    %v379 = vunpack.c.l.b16 %v114
    %v380 = vunpack.c.h.b16 %v114
    %v381 = vunpack.c.l.b16 %v115
    %v382 = vunpack.c.h.b16 %v115
    %v383 = vunpack.c.l.b16 %v116
    %v384 = vunpack.c.h.b16 %v116
    %v385 = vunpack.c.l.b16 %v117
    %v386 = vunpack.c.h.b16 %v117
    %v387 = vunpack.c.l.b16 %v118
    %v388 = vunpack.c.h.b16 %v118
    %v389 = vunpack.c.l.b16 %v119
    %v390 = vunpack.c.h.b16 %v119
    %v391 = vunpack.c.l.b16 %v120
    %v392 = vunpack.c.h.b16 %v120
    %v393 = vunpack.c.l.b16 %v121
    %v394 = vunpack.c.h.b16 %v121
    %v395 = vunpack.c.l.b16 %v122
    %v396 = vunpack.c.h.b16 %v122
    %v397 = vunpack.c.l.b16 %v123
    %v398 = vunpack.c.h.b16 %v123
    %v399 = vunpack.c.l.b16 %v124
    %v400 = vunpack.c.h.b16 %v124
    %v401 = vunpack.c.l.b16 %v125
    %v402 = vunpack.c.h.b16 %v125
    %v403 = vunpack.c.l.b16 %v126
    %v404 = vunpack.c.h.b16 %v126
    %v405 = vunpack.c.l.b16 %v127
    %v406 = vunpack.c.h.b16 %v127
    %v407 = vunpack.c.l.b16 %v128
    %v408 = vunpack.c.h.b16 %v128
    %v409 = vunpack.c.l.b16 %v129
    %v410 = vunpack.c.h.b16 %v129
    %v411 = vunpack.c.l.b16 %v130
    %v412 = vunpack.c.h.b16 %v130
    %v413 = vunpack.c.l.b16 %v131
    %v414 = vunpack.c.h.b16 %v131
    %v415 = vunpack.c.l.b16 %v132
    %v416 = vunpack.c.h.b16 %v132
    %v417 = vunpack.c.l.b16 %v133
    %v418 = vunpack.c.h.b16 %v133
    %v419 = vunpack.c.l.b16 %v134
    %v420 = vunpack.c.h.b16 %v134
    %v421 = vunpack.c.l.b16 %v135
    %v422 = vunpack.c.h.b16 %v135
    %v423 = vunpack.c.l.b16 %v136
    %v424 = vunpack.c.h.b16 %v136
    %v425 = vunpack.c.l.b16 %v137
    %v426 = vunpack.c.h.b16 %v137
    %v427 = vunpack.c.l.b16 %v138
    %v428 = vunpack.c.h.b16 %v138
    %v429 = vunpack.c.l.b16 %v139
    %v430 = vunpack.c.h.b16 %v139
    %v431 = vunpack.c.l.b16 %v140
    %v432 = vunpack.c.h.b16 %v140
    %v433 = vunpack.c.l.b16 %v141
    %v434 = vunpack.c.h.b16 %v141
    %v435 = vunpack.c.l.b16 %v142
    %v436 = vunpack.c.h.b16 %v142
    %v437 = vunpack.c.l.b16 %v143
    %v438 = vunpack.c.h.b16 %v143
    %v439 = vunpack.c.l.b16 %v144
    %v440 = vunpack.c.h.b16 %v144
    %v441 = vunpack.c.l.b16 %v145
    %v442 = vunpack.c.h.b16 %v145
    %v443 = vunpack.c.l.b16 %v146
    %v444 = vunpack.c.h.b16 %v146
    %v445 = vunpack.c.l.b16 %v147
    %v446 = vunpack.c.h.b16 %v147
    %v447 = vunpack.c.l.b16 %v148
    %v448 = vunpack.c.h.b16 %v148
    %v449 = vunpack.c.l.b16 %v149
    %v450 = vunpack.c.h.b16 %v149
    %v451 = vunpack.c.l.b16 %v150
    %v452 = vunpack.c.h.b16 %v150
    %v453 = vunpack.c.l.b16 %v151
    %v454 = vunpack.c.h.b16 %v151
    %v455 = vunpack.c.l.b16 %v152
    %v456 = vunpack.c.h.b16 %v152
    %v457 = vunpack.c.l.b16 %v153
    %v458 = vunpack.c.h.b16 %v153
    %v459 = vunpack.c.l.b16 %v154
    %v460 = vunpack.c.h.b16 %v154
    %v461 = vpack.c.b16 %v267, %v265
    %v462 = vpack.c.b16 %v268, %v266
    %v463 = vpack.c.b16 %v271, %v269
    %v464 = vpack.c.b16 %v272, %v270
    %v465 = vpack.c.b16 %v275, %v273
    %v466 = vpack.c.b16 %v276, %v274
    %v467 = vpack.c.b16 %v279, %v277
    %v468 = vpack.c.b16 %v280, %v278
    %v469 = vpack.c.b16 %v283, %v281
    %v470 = vpack.c.b16 %v284, %v282
    %v471 = vpack.c.b16 %v287, %v285
    %v472 = vpack.c.b16 %v288, %v286
    %v473 = vpack.c.b16 %v291, %v289
    %v474 = vpack.c.b16 %v292, %v290
    %v475 = vpack.c.b16 %v295, %v293
    %v476 = vpack.c.b16 %v296, %v294
    %v477 = vpack.c.b16 %v299, %v297
    %v478 = vpack.c.b16 %v300, %v298
    %v479 = vpack.c.b16 %v303, %v301
    %v480 = vpack.c.b16 %v304, %v302
    %v481 = vpack.c.b16 %v307, %v305
    %v482 = vpack.c.b16 %v308, %v306
    %v483 = vpack.c.b16 %v311, %v309
    %v484 = vpack.c.b16 %v312, %v310
    %v485 = vpack.c.b16 %v315, %v313
    %v486 = vpack.c.b16 %v316, %v314
    %v487 = vpack.c.b16 %v319, %v317
    %v488 = vpack.c.b16 %v320, %v318
    %v489 = vpack.c.b16 %v323, %v321
    %v490 = vpack.c.b16 %v324, %v322
    %v491 = vpack.c.b16 %v327, %v325
    %v492 = vpack.c.b16 %v328, %v326
    %v493 = vpack.c.b16 %v331, %v329
    %v494 = vpack.c.b16 %v332, %v330
    %v495 = vpack.c.b16 %v335, %v333
    %v496 = vpack.c.b16 %v336, %v334
    %v497 = vpack.c.b16 %v339, %v337
    %v498 = vpack.c.b16 %v340, %v338
    %v499 = vpack.c.b16 %v343, %v341
    %v500 = vpack.c.b16 %v344, %v342
    %v501 = vpack.c.b16 %v347, %v345
    %v502 = vpack.c.b16 %v348, %v346
    %v503 = vpack.c.b16 %v351, %v349
    %v504 = vpack.c.b16 %v352, %v350
    %v505 = vpack.c.b16 %v355, %v353
    %v506 = vpack.c.b16 %v356, %v354
    %v507 = vpack.c.b16 %v359, %v357
    %v508 = vpack.c.b16 %v360, %v358
    %v509 = vpack.c.b16 %v363, %v361
    %v510 = vpack.c.b16 %v364, %v362
    %v511 = vpack.c.b16 %v367, %v365
    %v512 = vpack.c.b16 %v368, %v366
    %v513 = vpack.c.b16 %v371, %v369
    %v514 = vpack.c.b16 %v372, %v370
    %v515 = vpack.c.b16 %v375, %v373
    %v516 = vpack.c.b16 %v376, %v374
    %v517 = vpack.c.b16 %v379, %v377
    %v518 = vpack.c.b16 %v380, %v378
    %v519 = vpack.c.b16 %v383, %v381
    %v520 = vpack.c.b16 %v384, %v382
    %v521 = vpack.c.b16 %v387, %v385
    %v522 = vpack.c.b16 %v388, %v386
    %v523 = vpack.c.b16 %v391, %v389
    %v524 = vpack.c.b16 %v392, %v390
    %v525 = vpack.c.b16 %v395, %v393
    %v526 = vpack.c.b16 %v396, %v394
    %v527 = vpack.c.b16 %v399, %v397
    %v528 = vpack.c.b16 %v400, %v398
    %v529 = vpack.c.b16 %v403, %v401
    %v530 = vpack.c.b16 %v404, %v402
    %v531 = vpack.c.b16 %v407, %v405
    %v532 = vpack.c.b16 %v408, %v406
    %v533 = vpack.c.b16 %v411, %v409
    %v534 = vpack.c.b16 %v412, %v410
    %v535 = vpack.c.b16 %v415, %v413
    %v536 = vpack.c.b16 %v416, %v414
    %v537 = vpack.c.b16 %v419, %v417
    %v538 = vpack.c.b16 %v420, %v418
    %v539 = vpack.c.b16 %v423, %v421
    %v540 = vpack.c.b16 %v424, %v422
    %v541 = vpack.c.b16 %v427, %v425
    %v542 = vpack.c.b16 %v428, %v426
    %v543 = vpack.c.b16 %v431, %v429
    %v544 = vpack.c.b16 %v432, %v430
    %v545 = vpack.c.b16 %v435, %v433
    %v546 = vpack.c.b16 %v436, %v434
    %v547 = vpack.c.b16 %v439, %v437
    %v548 = vpack.c.b16 %v440, %v438
    %v549 = vpack.c.b16 %v443, %v441
    %v550 = vpack.c.b16 %v444, %v442
    %v551 = vpack.c.b16 %v447, %v445
    %v552 = vpack.c.b16 %v448, %v446
    %v553 = vpack.c.b16 %v451, %v449
    %v554 = vpack.c.b16 %v452, %v450
    %v555 = vpack.c.b16 %v455, %v453
    %v556 = vpack.c.b16 %v456, %v454
    %v557 = vpack.c.b16 %v459, %v457
    %v558 = vpack.c.b16 %v460, %v458
    %vm657 = vcmask 130048
    %v659 = vsel %vm657, %v56, 0
    %661 = vmatprep.subr.bf16.mxu0 %v462
    %662 = vmatpush1.bf16.msra.mxu0 %v461
    %663 = vmatprep.subr.bf16.mxu0 %v464
    %664 = vmatpush1.bf16.msra.mxu0 %v463
    %665 = vmatprep.subr.bf16.mxu0 %v466
    %666 = vmatpush1.bf16.msra.mxu0 %v465
    %667 = vmatprep.subr.bf16.mxu0 %v468
    %668 = vmatpush1.bf16.msra.mxu0 %v467
    %669 = vmatprep.subr.bf16.mxu0 %v470
    %670 = vmatpush1.bf16.msra.mxu0 %v469
    %671 = vmatprep.subr.bf16.mxu0 %v472
    %672 = vmatpush1.bf16.msra.mxu0 %v471
    %673 = vmatprep.subr.bf16.mxu0 %v474
    %674 = vmatpush1.bf16.msra.mxu0 %v473
    %675 = vmatprep.subr.bf16.mxu0 %v476
    %676 = vmatpush1.bf16.msra.mxu0 %v475
    %677 = vmatprep.subr.bf16.mxu0 %v478
    %678 = vmatpush1.bf16.msra.mxu0 %v477
    %679 = vmatprep.subr.bf16.mxu0 %v480
    %680 = vmatpush1.bf16.msra.mxu0 %v479
    %681 = vmatprep.subr.bf16.mxu0 %v482
    %682 = vmatpush1.bf16.msra.mxu0 %v481
    %683 = vmatprep.subr.bf16.mxu0 %v484
    %684 = vmatpush1.bf16.msra.mxu0 %v483
    %685 = vmatprep.subr.bf16.mxu0 %v486
    %686 = vmatpush1.bf16.msra.mxu0 %v485
    %687 = vmatprep.subr.bf16.mxu0 %v488
    %688 = vmatpush1.bf16.msra.mxu0 %v487
    %689 = vmatprep.subr.bf16.mxu0 %v490
    %690 = vmatpush1.bf16.msra.mxu0 %v489
    %691 = vmatprep.subr.bf16.mxu0 %v492
    %692 = vmatpush1.bf16.msra.mxu0 %v491
    %693 = vmatprep.mubr.bf16.mxu0 %v51
    %694 = vmatmul.mubr.bf16.gmra.mrb[0].mxu0 %v50
    %v695 = vpop.f32.mrb[0].mxu0
    %v696 = vadd.f32 %v160, %v695
    %v697 = vpop.f32.mrb[0].mxu0
    %v698 = vadd.f32 %v164, %v697
    %v699 = vpop.f32.mrb[0].mxu0
    %v700 = vadd.f32 %v160, %v699
    %v701 = vpop.f32.mrb[0].mxu0
    %v702 = vadd.f32 %v164, %v701
    %703 = vdwg.mxu0
    %704 = vmatprep.subr.bf16.mxu0 %v494
    %705 = vmatpush1.bf16.msra.mxu0 %v493
    %706 = vmatprep.subr.bf16.mxu0 %v496
    %707 = vmatpush1.bf16.msra.mxu0 %v495
    %708 = vmatprep.subr.bf16.mxu0 %v498
    %709 = vmatpush1.bf16.msra.mxu0 %v497
    %710 = vmatprep.subr.bf16.mxu0 %v500
    %711 = vmatpush1.bf16.msra.mxu0 %v499
    %712 = vmatprep.subr.bf16.mxu0 %v502
    %713 = vmatpush1.bf16.msra.mxu0 %v501
    %714 = vmatprep.subr.bf16.mxu0 %v504
    %715 = vmatpush1.bf16.msra.mxu0 %v503
    %716 = vmatprep.subr.bf16.mxu0 %v506
    %717 = vmatpush1.bf16.msra.mxu0 %v505
    %718 = vmatprep.subr.bf16.mxu0 %v508
    %719 = vmatpush1.bf16.msra.mxu0 %v507
    %720 = vmatprep.subr.bf16.mxu0 %v510
    %721 = vmatpush1.bf16.msra.mxu0 %v509
    %722 = vmatprep.subr.bf16.mxu0 %v512
    %723 = vmatpush1.bf16.msra.mxu0 %v511
    %724 = vmatprep.subr.bf16.mxu0 %v514
    %725 = vmatpush1.bf16.msra.mxu0 %v513
    %726 = vmatprep.subr.bf16.mxu0 %v516
    %727 = vmatpush1.bf16.msra.mxu0 %v515
    %728 = vmatprep.subr.bf16.mxu0 %v518
    %729 = vmatpush1.bf16.msra.mxu0 %v517
    %730 = vmatprep.subr.bf16.mxu0 %v520
    %731 = vmatpush1.bf16.msra.mxu0 %v519
    %732 = vmatprep.subr.bf16.mxu0 %v522
    %733 = vmatpush1.bf16.msra.mxu0 %v521
    %734 = vmatprep.subr.bf16.mxu0 %v524
    %735 = vmatpush1.bf16.msra.mxu0 %v523
    %736 = vmatprep.mubr.bf16.mxu0 %v53
    %737 = vmatmul.mubr.bf16.gmra.mrb[0].mxu0 %v52
    %v738 = vpop.f32.mrb[0].mxu0
    %v739 = vadd.f32 %v696, %v738
    %v740 = vpop.f32.mrb[0].mxu0
    %v741 = vadd.f32 %v698, %v740
    %v742 = vpop.f32.mrb[0].mxu0
    %v743 = vadd.f32 %v700, %v742
    %v744 = vpop.f32.mrb[0].mxu0
    %v745 = vadd.f32 %v702, %v744
    %746 = vdwg.mxu0
    %747 = vmatprep.subr.bf16.mxu0 %v526
    %748 = vmatpush1.bf16.msra.mxu0 %v525
    %749 = vmatprep.subr.bf16.mxu0 %v528
    %750 = vmatpush1.bf16.msra.mxu0 %v527
    %751 = vmatprep.subr.bf16.mxu0 %v530
    %752 = vmatpush1.bf16.msra.mxu0 %v529
    %753 = vmatprep.subr.bf16.mxu0 %v532
    %754 = vmatpush1.bf16.msra.mxu0 %v531
    %755 = vmatprep.subr.bf16.mxu0 %v534
    %756 = vmatpush1.bf16.msra.mxu0 %v533
    %757 = vmatprep.subr.bf16.mxu0 %v536
    %758 = vmatpush1.bf16.msra.mxu0 %v535
    %759 = vmatprep.subr.bf16.mxu0 %v538
    %760 = vmatpush1.bf16.msra.mxu0 %v537
    %761 = vmatprep.subr.bf16.mxu0 %v540
    %762 = vmatpush1.bf16.msra.mxu0 %v539
    %763 = vmatprep.subr.bf16.mxu0 %v542
    %764 = vmatpush1.bf16.msra.mxu0 %v541
    %765 = vmatprep.subr.bf16.mxu0 %v544
    %766 = vmatpush1.bf16.msra.mxu0 %v543
    %767 = vmatprep.subr.bf16.mxu0 %v546
    %768 = vmatpush1.bf16.msra.mxu0 %v545
    %769 = vmatprep.subr.bf16.mxu0 %v548
    %770 = vmatpush1.bf16.msra.mxu0 %v547
    %771 = vmatprep.subr.bf16.mxu0 %v550
    %772 = vmatpush1.bf16.msra.mxu0 %v549
    %773 = vmatprep.subr.bf16.mxu0 %v552
    %774 = vmatpush1.bf16.msra.mxu0 %v551
    %775 = vmatprep.subr.bf16.mxu0 %v554
    %776 = vmatpush1.bf16.msra.mxu0 %v553
    %777 = vmatprep.subr.bf16.mxu0 %v556
    %778 = vmatpush1.bf16.msra.mxu0 %v555
    %779 = vmatprep.mubr.bf16.mxu0 %v55
    %780 = vmatmul.mubr.bf16.gmra.mrb[0].mxu0 %v54
    %v781 = vpop.f32.mrb[0].mxu0
    %v782 = vadd.f32 %v739, %v781
    %v783 = vpop.f32.mrb[0].mxu0
    %v784 = vadd.f32 %v741, %v783
    %v785 = vpop.f32.mrb[0].mxu0
    %v786 = vadd.f32 %v743, %v785
    %v787 = vpop.f32.mrb[0].mxu0
    %v788 = vadd.f32 %v745, %v787
    %789 = vdwg.mxu0
    %790 = vmatprep.subr.bf16.mxu0 %v558
    %791 = vmatpush1.bf16.msra.mxu0 %v557
    %792 = vmatprep.subr.bf16.mxu0 0
    %793 = vmatpush1.bf16.msra.mxu0 0
    %794 = vmatprep.subr.bf16.mxu0 0
    %795 = vmatpush1.bf16.msra.mxu0 0
    %796 = vmatprep.subr.bf16.mxu0 0
    %797 = vmatpush1.bf16.msra.mxu0 0
    %798 = vmatprep.subr.bf16.mxu0 0
    %799 = vmatpush1.bf16.msra.mxu0 0
    %800 = vmatprep.subr.bf16.mxu0 0
    %801 = vmatpush1.bf16.msra.mxu0 0
    %802 = vmatprep.subr.bf16.mxu0 0
    %803 = vmatpush1.bf16.msra.mxu0 0
    %804 = vmatprep.subr.bf16.mxu0 0
    %805 = vmatpush1.bf16.msra.mxu0 0
    %806 = vmatprep.subr.bf16.mxu0 0
    %807 = vmatpush1.bf16.msra.mxu0 0
    %808 = vmatprep.subr.bf16.mxu0 0
    %809 = vmatpush1.bf16.msra.mxu0 0
    %810 = vmatprep.subr.bf16.mxu0 0
    %811 = vmatpush1.bf16.msra.mxu0 0
    %812 = vmatprep.subr.bf16.mxu0 0
    %813 = vmatpush1.bf16.msra.mxu0 0
    %814 = vmatprep.subr.bf16.mxu0 0
    %815 = vmatpush1.bf16.msra.mxu0 0
    %816 = vmatprep.subr.bf16.mxu0 0
    %817 = vmatpush1.bf16.msra.mxu0 0
    %818 = vmatprep.subr.bf16.mxu0 0
    %819 = vmatpush1.bf16.msra.mxu0 0
    %820 = vmatprep.subr.bf16.mxu0 0
    %821 = vmatpush1.bf16.msra.mxu0 0
    %822 = vmatprep.mubr.bf16.mxu0 0
    %823 = vmatmul.mubr.bf16.gmra.mrb[0].mxu0 %v659
    %v824 = vpop.f32.mrb[0].mxu0
    %v825 = vadd.f32 %v782, %v824
    %v826 = vpop.f32.mrb[0].mxu0
    %v827 = vadd.f32 %v784, %v826
    %v828 = vpop.f32.mrb[0].mxu0
    %v829 = vadd.f32 %v786, %v828
    %v830 = vpop.f32.mrb[0].mxu0
    %v831 = vadd.f32 %v788, %v830
    %832 = vdwg.mxu0
    %v833 = vmax.f32 %v825, 0.0
    %v834 = vmax.f32 %v827, 0.0
    %v835 = vmax.f32 %v829, 0.0
    %v836 = vmax.f32 %v831, 0.0
    %v837 = vpack.c.bf16 %v835, %v833
    %v838 = vpack.c.bf16 %v836, %v834
    %v839 = vld [vmem:[%s3] sm:$0xf]
    %v840 = vld [vmem:[%s3 + $0x4] sm:$0xf]
    %v841 = vld [vmem:[%s3 + $0x8] sm:$0xf]
    %v842 = vld [vmem:[%s3 + $0xc] sm:$0xf]
    %v843 = vld [vmem:[%s3 + $0x10] sm:$0xf]
    %v844 = vld [vmem:[%s3 + $0x14] sm:$0xf]
    %v845 = vld [vmem:[%s3 + $0x18] sm:$0xf]
    %v846 = vld [vmem:[%s3 + $0x1c] sm:$0xf]
    %v847 = vld [vmem:[%s3 + $0x20] sm:$0xf]
    %v848 = vld [vmem:[%s3 + $0x24] sm:$0xf]
    %v849 = vld [vmem:[%s3 + $0x28] sm:$0xf]
    %v850 = vld [vmem:[%s3 + $0x2c] sm:$0xf]
    %v851 = vld [vmem:[%s3 + $0x30] sm:$0xf]
    %v852 = vld [vmem:[%s3 + $0x34] sm:$0xf]
    %v853 = vld [vmem:[%s3 + $0x38] sm:$0xf]
    %v854 = vld [vmem:[%s3 + $0x3c] sm:$0xf]
    %v855 = vld [vmem:[%s3 + $0x40] sm:$0xf]
    %v856 = vld [vmem:[%s3 + $0x44] sm:$0xf]
    %v857 = vld [vmem:[%s3 + $0x48] sm:$0xf]
    %v858 = vld [vmem:[%s3 + $0x4c] sm:$0xf]
    %v859 = vld [vmem:[%s3 + $0x50] sm:$0xf]
    %v860 = vld [vmem:[%s3 + $0x54] sm:$0xf]
    %v861 = vld [vmem:[%s3 + $0x58] sm:$0xf]
    %v862 = vld [vmem:[%s3 + $0x5c] sm:$0xf]
    %v863 = vld [vmem:[%s3 + $0x60] sm:$0xf]
    %v864 = vld [vmem:[%s3 + $0x64] sm:$0xf]
    %v865 = vld [vmem:[%s3 + $0x68] sm:$0xf]
    %v866 = vld [vmem:[%s3 + $0x6c] sm:$0xf]
    %v867 = vld [vmem:[%s3 + $0x70] sm:$0xf]
    %v868 = vld [vmem:[%s3 + $0x74] sm:$0xf]
    %v869 = vld [vmem:[%s3 + $0x78] sm:$0xf]
    %v870 = vld [vmem:[%s3 + $0x7c] sm:$0xf]
    %v871 = vld [vmem:[%s4] sm:$0x1]
    %v873 = vlaneseq
    %v874 = vshrl.u32 %v873, 7
    %v875 = vsub.s32 0, %v874
    %v876 = vrot.slane %v871, %v875
    %v910 = vunpack.c.l.b16 %v839
    %v911 = vunpack.c.l.b16 %v840
    %v912 = vunpack.c.l.b16 %v841
    %v913 = vunpack.c.l.b16 %v842
    %v914 = vunpack.c.l.b16 %v843
    %v915 = vunpack.c.l.b16 %v844
    %v916 = vunpack.c.l.b16 %v845
    %v917 = vunpack.c.l.b16 %v846
    %v918 = vunpack.c.l.b16 %v847
    %v919 = vunpack.c.l.b16 %v848
    %v920 = vunpack.c.l.b16 %v849
    %v921 = vunpack.c.l.b16 %v850
    %v922 = vunpack.c.l.b16 %v851
    %v923 = vunpack.c.l.b16 %v852
    %v924 = vunpack.c.l.b16 %v853
    %v925 = vunpack.c.l.b16 %v854
    %v926 = vunpack.c.l.b16 %v855
    %v927 = vunpack.c.l.b16 %v856
    %v928 = vunpack.c.l.b16 %v857
    %v929 = vunpack.c.l.b16 %v858
    %v930 = vunpack.c.l.b16 %v859
    %v931 = vunpack.c.l.b16 %v860
    %v932 = vunpack.c.l.b16 %v861
    %v933 = vunpack.c.l.b16 %v862
    %v934 = vunpack.c.l.b16 %v863
    %v935 = vunpack.c.l.b16 %v864
    %v936 = vunpack.c.l.b16 %v865
    %v937 = vunpack.c.l.b16 %v866
    %v938 = vunpack.c.l.b16 %v867
    %v939 = vunpack.c.l.b16 %v868
    %v940 = vunpack.c.l.b16 %v869
    %v941 = vunpack.c.l.b16 %v870
    %v942 = vpack.c.b16 %v911, %v910
    %v943 = vpack.c.b16 %v913, %v912
    %v944 = vpack.c.b16 %v915, %v914
    %v945 = vpack.c.b16 %v917, %v916
    %v946 = vpack.c.b16 %v919, %v918
    %v947 = vpack.c.b16 %v921, %v920
    %v948 = vpack.c.b16 %v923, %v922
    %v949 = vpack.c.b16 %v925, %v924
    %v950 = vpack.c.b16 %v927, %v926
    %v951 = vpack.c.b16 %v929, %v928
    %v952 = vpack.c.b16 %v931, %v930
    %v953 = vpack.c.b16 %v933, %v932
    %v954 = vpack.c.b16 %v935, %v934
    %v955 = vpack.c.b16 %v937, %v936
    %v956 = vpack.c.b16 %v939, %v938
    %v957 = vpack.c.b16 %v941, %v940
    %974 = vmatprep.subr.bf16.mxu0 0
    %975 = vmatpush1.bf16.msra.mxu0 %v942
    %976 = vmatprep.subr.bf16.mxu0 0
    %977 = vmatpush1.bf16.msra.mxu0 %v943
    %978 = vmatprep.subr.bf16.mxu0 0
    %979 = vmatpush1.bf16.msra.mxu0 %v944
    %980 = vmatprep.subr.bf16.mxu0 0
    %981 = vmatpush1.bf16.msra.mxu0 %v945
    %982 = vmatprep.subr.bf16.mxu0 0
    %983 = vmatpush1.bf16.msra.mxu0 %v946
    %984 = vmatprep.subr.bf16.mxu0 0
    %985 = vmatpush1.bf16.msra.mxu0 %v947
    %986 = vmatprep.subr.bf16.mxu0 0
    %987 = vmatpush1.bf16.msra.mxu0 %v948
    %988 = vmatprep.subr.bf16.mxu0 0
    %989 = vmatpush1.bf16.msra.mxu0 %v949
    %990 = vmatprep.subr.bf16.mxu0 0
    %991 = vmatpush1.bf16.msra.mxu0 %v950
    %992 = vmatprep.subr.bf16.mxu0 0
    %993 = vmatpush1.bf16.msra.mxu0 %v951
    %994 = vmatprep.subr.bf16.mxu0 0
    %995 = vmatpush1.bf16.msra.mxu0 %v952
    %996 = vmatprep.subr.bf16.mxu0 0
    %997 = vmatpush1.bf16.msra.mxu0 %v953
    %998 = vmatprep.subr.bf16.mxu0 0
    %999 = vmatpush1.bf16.msra.mxu0 %v954
    %1000 = vmatprep.subr.bf16.mxu0 0
    %1001 = vmatpush1.bf16.msra.mxu0 %v955
    %1002 = vmatprep.subr.bf16.mxu0 0
    %1003 = vmatpush1.bf16.msra.mxu0 %v956
    %1004 = vmatprep.subr.bf16.mxu0 0
    %1005 = vmatpush1.bf16.msra.mxu0 %v957
    %1006 = vmatprep.mubr.bf16.mxu0 %v838
    %1007 = vmatmul.mubr.bf16.gmra.mrb[0].mxu0 %v837
    %v1008 = vpop.f32.mrb[0].mxu0
    %v1009 = vadd.f32 %v876, %v1008
    %v1010 = vpop.f32.mrb[0].mxu0
    %v1011 = vpop.f32.mrb[0].mxu0
    %v1012 = vadd.f32 %v876, %v1011
    %v1013 = vpop.f32.mrb[0].mxu0
    %1014 = vdwg.mxu0
    %vm1015 = vcmask 80896
    %1016 = vst.msk [vmem:[#allocation5] sm:$0xff] %vm1015, %v1009
    %1017 = vst.msk [vmem:[#allocation5 + $0x8] sm:$0xff] %vm1015, %v1012
    // Predicated region
    $region26: #{tpu_custom_call.1} parent=1 // pred_check
      _
    $region27: #{tpu_custom_call.1} parent=1 // pred_check_branch
      %1019 = sbr.rel (0) target = $region29
    $region28: #{tpu_custom_call.1} parent=1 // pred_region
      %s1021 = ssub.s32 256, 256
      %1022 = vsyncadd [#allocation4], %s1021
      %s1023 = sshll.u32 [#allocation5], 4
      %s1024 = int_to_ptr.vmem [resolvable:$true] %s1023
      %1029 = dma.vmem_to_hbm [thread:$0]  %s1024, 256, %s5, [#allocation4], 128, 128, 8
    $region29: #{tpu_custom_call.1} parent=1 // pred_fallthru
      _
    // Predicated region
    $region30: #{tpu_custom_call.1} parent=1 // pred_check
      _
    $region31: #{tpu_custom_call.1} parent=1 // pred_check_branch
      %1031 = sbr.rel (0) target = $region33
    $region32: #{tpu_custom_call.1} parent=1 // pred_region
      %1032 = dma.done [#allocation4], 256
    $region33: #{tpu_custom_call.1} parent=1 // pred_fallthru
      _
    %1033 = vsyncpa [#allocation3], 1
    %1034 = vsyncpa [#allocation4], 1

</llo_original>
